<compile_context>
chip_gen: v6e
topology: v6e:2x2x1
jax: 0.10.0
libtpu: 0.0.40
codegen_flags: <defaults>
</compile_context>

<pallas_src>
import jax
import jax.numpy as jnp
from jax.experimental import pallas as pl
from jax.experimental.pallas import tpu as pltpu


# ----------------------------------------------------------------------------
# Kernels
# ----------------------------------------------------------------------------
def _disc_kernel_single(x_ref, w1_ref, b1_ref, w2_ref, b2_ref, o_ref):
    """Whole discriminator in one grid step: x@W1 + b1 -> LeakyReLU -> @W2 + b2."""
    x = x_ref[...].astype(jnp.bfloat16)                        # [B_TILE, F]
    h = jnp.dot(x, w1_ref[...], preferred_element_type=jnp.float32) + b1_ref[...]
    h = jnp.where(h > 0.0, h, 0.2 * h)                         # LeakyReLU(0.2)
    out = jnp.dot(h.astype(jnp.bfloat16), w2_ref[...],
                  preferred_element_type=jnp.float32) + b2_ref[...]
    o_ref[...] = out.astype(o_ref.dtype)                       # lane-dense store


def _disc_kernel_ktiled(x_ref, w1_ref, b1_ref, w2_ref, b2_ref, o_ref, acc_ref):
    """K-tiled variant for large F: f32 accumulator + epilogue on last K step.

    NOTE: correctness relies on the K-reduction axis being the INNERMOST grid
    axis (output block resident across k).  Do not reorder the grid.
    """
    k = pl.program_id(1)

    @pl.when(k == 0)
    def _init():
        acc_ref[...] = jnp.zeros_like(acc_ref)

    x = x_ref[...].astype(jnp.bfloat16)                        # [B_TILE, K_TILE]
    acc_ref[...] += jnp.dot(x, w1_ref[...], preferred_element_type=jnp.float32)

    @pl.when(k == pl.num_programs(1) - 1)
    def _epilogue():
        h = acc_ref[...] + b1_ref[...]                         # [B_TILE, HID] f32
        h = jnp.where(h > 0.0, h, 0.2 * h)
        out = jnp.dot(h.astype(jnp.bfloat16), w2_ref[...],
                      preferred_element_type=jnp.float32) + b2_ref[...]
        o_ref[...] = out.astype(o_ref.dtype)


# ----------------------------------------------------------------------------
# Sizing helpers
# ----------------------------------------------------------------------------
def _pick_vmem_limit_bytes():
    """Per-generation VMEM budget: ~100 MiB on 128 MiB chips (v5e/v6e), 32 MiB-safe
    otherwise (v7x has 64 MiB physical / 32 MiB scoped default)."""
    try:
        phys = pltpu.get_tpu_info().vmem_capacity_bytes
    except Exception:
        phys = 64 * 1024 * 1024
    if phys >= 128 * 1024 * 1024:
        return 100 * 1024 * 1024
    return 32 * 1024 * 1024


def _footprint_bytes(b_tile, k_tile, hid, nout):
    """Conservative working-set estimate (double-buffered inputs/outputs)."""
    x_b = 2 * b_tile * k_tile * 4
    w1_b = 2 * k_tile * hid * 2
    w2_b = 2 * hid * nout * 2
    bias_b = 2 * (hid + nout) * 4 * 2
    out_b = 2 * b_tile * nout * 4
    acc_b = b_tile * hid * 4
    return x_b + w1_b + w2_b + bias_b + out_b + acc_b


def _pick_b_tile(b_pad):
    """Prefer >=2 batch tiles (v7x megacore) when batch is large, keeping each
    tile a multiple of 8 sublanes that divides the padded batch."""
    for cand in (128, 64, 32, 16, 8):
        if b_pad >= 2 * cand and b_pad % cand == 0:
            return cand
    return b_pad


def _pick_k_tile(f, b_tile, hid, nout, budget):
    """Collapse the K grid (k_tile == F) whenever the full problem fits the
    budget; otherwise the largest 128-aligned divisor of F that fits."""
    if _footprint_bytes(b_tile, f, hid, nout) <= budget:
        return f
    best = None
    for k_tile in range(128, f, 128):
        if f % k_tile == 0 and _footprint_bytes(b_tile, k_tile, hid, nout) <= budget:
            best = k_tile
    return best if best is not None else f


# ----------------------------------------------------------------------------
# Wrapper: fold flips into W1, layout plumbing, pallas_call.
# ----------------------------------------------------------------------------
def aug_wrapper_forward(images, flags, w1, b1, w2, b2, *,
                        max_working_set_bytes=None):
    B, C, D_, H, W = images.shape
    CD = C * D_
    F = CD * H * W
    HID = w1.shape[-1]
    NOUT = w2.shape[-1]

    vmem_limit = _pick_vmem_limit_bytes()
    budget = (max_working_set_bytes if max_working_set_bytes is not None
              else int(vmem_limit * 0.75))

    # flags[0]: aug block fires at all; flags[1]: H flip (dim 3);
    # flags[2]/flags[3]: W flips (dim 4 / dim -1) — two W flips cancel -> XOR.
    do_aug = flags[0] == 1
    fh = jnp.logical_and(do_aug, flags[1] == 1)
    fw = jnp.logical_and(do_aug, flags[2] != flags[3])

    # Hoisted flip: one cheap XLA pass over W1 (runtime-flag gated), done once,
    # instead of per-grid-step reversal work inside the kernel hot loop.
    #   flip_hw(x) @ W1 == x @ flip_hw_rows(W1)
    w1_4d = w1.reshape(CD, H, W, HID).astype(jnp.bfloat16)
    w1_4d = jnp.where(fh, jnp.flip(w1_4d, axis=1), w1_4d)
    w1_4d = jnp.where(fw, jnp.flip(w1_4d, axis=2), w1_4d)
    w1_eff = w1_4d.reshape(F, HID)
    w2_bf = w2.astype(jnp.bfloat16)

    # Flat, lane-dense image stream; pad batch to a full sublane group so the
    # MXU M dim / x-tile sublanes are not mostly idle at tiny batch.
    x = images.reshape(B, F)
    B_pad = max(8, pl.cdiv(B, 8) * 8)
    if B_pad != B:
        x = jnp.pad(x, ((0, B_pad - B), (0, 0)))

    b_tile = _pick_b_tile(B_pad)
    n_b = B_pad // b_tile
    k_tile = _pick_k_tile(F, b_tile, HID, NOUT, budget)

    if k_tile == F:
        # Single-step path: everything resident in VMEM, no reduction grid.
        out = pl.pallas_call(
            _disc_kernel_single,
            out_shape=jax.ShapeDtypeStruct((B_pad, NOUT), jnp.float32),
            grid_spec=pltpu.PrefetchScalarGridSpec(
                num_scalar_prefetch=0,
                grid=(n_b,),
                in_specs=[
                    pl.BlockSpec((b_tile, F), lambda ib: (ib, 0)),
                    pl.BlockSpec((F, HID), lambda ib: (0, 0)),
                    pl.BlockSpec((1, HID), lambda ib: (0, 0)),
                    pl.BlockSpec((HID, NOUT), lambda ib: (0, 0)),
                    pl.BlockSpec((1, NOUT), lambda ib: (0, 0)),
                ],
                out_specs=pl.BlockSpec((b_tile, NOUT), lambda ib: (ib, 0)),
            ),
            compiler_params=pltpu.CompilerParams(
                dimension_semantics=("parallel",),
                vmem_limit_bytes=vmem_limit,
            ),
        )(x, w1_eff, b1, w2_bf, b2)
    else:
        # K-tiled path for very large F: reduction axis last + 'arbitrary'.
        out = pl.pallas_call(
            _disc_kernel_ktiled,
            out_shape=jax.ShapeDtypeStruct((B_pad, NOUT), jnp.float32),
            grid_spec=pltpu.PrefetchScalarGridSpec(
                num_scalar_prefetch=0,
                grid=(n_b, F // k_tile),
                in_specs=[
                    pl.BlockSpec((b_tile, k_tile), lambda ib, k: (ib, k)),
                    pl.BlockSpec((k_tile, HID), lambda ib, k: (k, 0)),
                    pl.BlockSpec((1, HID), lambda ib, k: (0, 0)),
                    pl.BlockSpec((HID, NOUT), lambda ib, k: (0, 0)),
                    pl.BlockSpec((1, NOUT), lambda ib, k: (0, 0)),
                ],
                out_specs=pl.BlockSpec((b_tile, NOUT), lambda ib, k: (ib, 0)),
                scratch_shapes=[pltpu.VMEM((b_tile, HID), jnp.float32)],
            ),
            compiler_params=pltpu.CompilerParams(
                dimension_semantics=("parallel", "arbitrary"),
                vmem_limit_bytes=vmem_limit,
            ),
        )(x, w1_eff, b1, w2_bf, b2)

    return out[:B, :1]                                         # real score = col 0


# ----------------------------------------------------------------------------
# Pure-JAX reference (flips the images directly; same bf16 weight math).
# ----------------------------------------------------------------------------
def reference_forward(images, flags_np, w1, b1, w2_col, b2_col):
    do_aug, fh, fv, fz = [bool(int(v)) for v in flags_np]
    imgs = images
    if do_aug:
        if fh:
            imgs = jnp.flip(imgs, axis=3)
        if fv:
            imgs = jnp.flip(imgs, axis=4)
        if fz:
            imgs = jnp.flip(imgs, axis=-1)
    Bx = imgs.shape[0]
    x = imgs.reshape(Bx, -1).astype(jnp.bfloat16)
    h = jnp.dot(x, w1.astype(jnp.bfloat16),
                preferred_element_type=jnp.float32) + b1
    h = jnp.where(h > 0.0, h, 0.2 * h)
    out = jnp.dot(h.astype(jnp.bfloat16), w2_col.astype(jnp.bfloat16),
                  preferred_element_type=jnp.float32) + b2_col
    return out


if __name__ == "__main__":
    key = jax.random.PRNGKey(0)
    k_img, k_rng, k_w1, k_w2 = jax.random.split(key, 4)

    # Small 5-D input consistent with flips over dims 3, 4, -1.
    B, C, D_, H, W = 2, 4, 4, 8, 16
    CD = C * D_
    F = CD * H * W                       # 2048
    HID = 128                            # lane-dense hidden width
    NOUT = 128                           # lane-dense score slab; score = col 0

    images = jax.random.normal(k_img, (B, C, D_, H, W), dtype=jnp.float32)

    # Deterministic replacement for Python's random(): aug block fires when
    # u0 < prob, each individual flip fires when its draw <= 0.2.
    prob = 0.2
    u = jax.random.uniform(k_rng, (4,))
    flags = jnp.array(
        [u[0] < prob, u[1] <= 0.2, u[2] <= 0.2, u[3] <= 0.2], dtype=jnp.int32)
    # Force the aug path plus both an H flip and a net W flip so every
    # runtime branch is exercised by the checks below.
    flags = flags.at[0].set(1).at[1].set(1).at[2].set(1).at[3].set(0)

    # Synthetic discriminator parameters (D is unspecified in the module).
    w1 = jax.random.normal(k_w1, (F, HID), dtype=jnp.float32) * 0.02
    b1 = jnp.zeros((1, HID), dtype=jnp.float32)
    w2_col = jax.random.normal(k_w2, (HID, 1), dtype=jnp.float32) * 0.1
    b2_col = jnp.zeros((1, 1), dtype=jnp.float32)
    # Lane-dense padding of the 1-wide head (zeros in columns 1..127).
    w2 = jnp.zeros((HID, NOUT), jnp.float32).at[:, :1].set(w2_col)
    b2 = jnp.zeros((1, NOUT), jnp.float32).at[:, :1].set(b2_col)

    fwd = jax.jit(aug_wrapper_forward, static_argnames=("max_working_set_bytes",))

    # Path 1 (default): flips hoisted into W1 + single-step grid (all in VMEM).
    out = jax.block_until_ready(fwd(images, flags, w1, b1, w2, b2))

    # Path 2: force the K-tiled reduction path (used when F*HID is very large).
    out_kt = jax.block_until_ready(
        fwd(images, flags, w1, b1, w2, b2, max_working_set_bytes=600_000))

    # Path 3: no-augmentation path (flags[0] = 0).
    flags_noaug = flags.at[0].set(0)
    out_na = jax.block_until_ready(fwd(images, flags_noaug, w1, b1, w2, b2))

    ref = reference_forward(images, jax.device_get(flags), w1, b1, w2_col, b2_col)
    ref_na = reference_forward(images, jax.device_get(flags_noaug),
                               w1, b1, w2_col, b2_col)

    assert out.shape == (B, 1) and out_kt.shape == (B, 1) and out_na.shape == (B, 1)
    assert jnp.allclose(out, ref, atol=2e-3, rtol=2e-3), (out, ref)
    assert jnp.allclose(out_kt, ref, atol=2e-3, rtol=2e-3), (out_kt, ref)
    assert jnp.allclose(out_na, ref_na, atol=2e-3, rtol=2e-3), (out_na, ref_na)

    # TODO(synk): `detach=True` (autograd graph detach) has no Pallas analogue;
    # it is a no-op in this forward-only implementation.
    print("KERNEL_OK")
</pallas_src>

<mosaic_0001>
module attributes {stable_mosaic.version = 11 : i64} {
  func.func @_disc_kernel_single(%arg0: i32, %arg1: memref<8x2048xf32, #tpu.memory_space<vmem>>, %arg2: memref<2048x128xbf16, #tpu.memory_space<vmem>>, %arg3: memref<1x128xf32, #tpu.memory_space<vmem>>, %arg4: memref<128x128xbf16, #tpu.memory_space<vmem>>, %arg5: memref<1x128xf32, #tpu.memory_space<vmem>>, %arg6: memref<8x128xf32, #tpu.memory_space<vmem>>) attributes {dimension_semantics = [#tpu.dimension_semantics<parallel>], iteration_bounds = array<i64: 1>, scalar_prefetch = 0 : i64, scratch_operands = 0 : i64, tpu.core_type = #tpu.core_type<tc>, window_params = [{transform_indices = @transform_0, window_bounds = array<i64: 8, 2048>}, {pipeline_mode = #tpu.pipeline_mode<synchronous>, transform_indices = @transform_1, window_bounds = array<i64: 2048, 128>}, {pipeline_mode = #tpu.pipeline_mode<synchronous>, transform_indices = @transform_2, window_bounds = array<i64: 1, 128>}, {pipeline_mode = #tpu.pipeline_mode<synchronous>, transform_indices = @transform_3, window_bounds = array<i64: 128, 128>}, {pipeline_mode = #tpu.pipeline_mode<synchronous>, transform_indices = @transform_4, window_bounds = array<i64: 1, 128>}, {transform_indices = @transform_5, window_bounds = array<i64: 8, 128>}]} {
    %c0 = arith.constant 0 : index
    %c0_0 = arith.constant 0 : index
    %0 = vector.load %arg1[%c0, %c0_0] : memref<8x2048xf32, #tpu.memory_space<vmem>>, vector<8x2048xf32>
    %1 = arith.truncf %0 : vector<8x2048xf32> to vector<8x2048xbf16>
    %c0_1 = arith.constant 0 : index
    %c0_2 = arith.constant 0 : index
    %2 = vector.load %arg2[%c0_1, %c0_2] : memref<2048x128xbf16, #tpu.memory_space<vmem>>, vector<2048x128xbf16>
    %cst = arith.constant dense<0.000000e+00> : vector<8x128xf32>
    %3 = tpu.matmul %1, %2, %cst {dimension_numbers = #tpu.dot_dimension_numbers<[1], [0], [0], [1], [0, 0, 1, 1], [], []>} : vector<8x2048xbf16>, vector<2048x128xbf16>, vector<8x128xf32> -> vector<8x128xf32>
    %c0_3 = arith.constant 0 : index
    %c0_4 = arith.constant 0 : index
    %4 = vector.load %arg3[%c0_3, %c0_4] : memref<1x128xf32, #tpu.memory_space<vmem>>, vector<1x128xf32>
    %5 = vector.broadcast %4 : vector<1x128xf32> to vector<8x128xf32>
    %6 = arith.addf %3, %5 : vector<8x128xf32>
    %cst_5 = arith.constant 0.000000e+00 : f32
    %7 = vector.broadcast %cst_5 : f32 to vector<8x128xf32>
    %8 = arith.cmpf ogt, %6, %7 : vector<8x128xf32>
    %cst_6 = arith.constant 2.000000e-01 : f32
    %9 = vector.broadcast %cst_6 : f32 to vector<8x128xf32>
    %10 = arith.mulf %9, %6 : vector<8x128xf32>
    %11 = arith.select %8, %6, %10 : vector<8x128xi1>, vector<8x128xf32>
    %12 = arith.truncf %11 : vector<8x128xf32> to vector<8x128xbf16>
    %c0_7 = arith.constant 0 : index
    %c0_8 = arith.constant 0 : index
    %13 = vector.load %arg4[%c0_7, %c0_8] : memref<128x128xbf16, #tpu.memory_space<vmem>>, vector<128x128xbf16>
    %cst_9 = arith.constant dense<0.000000e+00> : vector<8x128xf32>
    %14 = tpu.matmul %12, %13, %cst_9 {dimension_numbers = #tpu.dot_dimension_numbers<[1], [0], [0], [1], [0, 0, 1, 1], [], []>} : vector<8x128xbf16>, vector<128x128xbf16>, vector<8x128xf32> -> vector<8x128xf32>
    %c0_10 = arith.constant 0 : index
    %c0_11 = arith.constant 0 : index
    %15 = vector.load %arg5[%c0_10, %c0_11] : memref<1x128xf32, #tpu.memory_space<vmem>>, vector<1x128xf32>
    %16 = vector.broadcast %15 : vector<1x128xf32> to vector<8x128xf32>
    %17 = arith.addf %14, %16 : vector<8x128xf32>
    %c0_12 = arith.constant 0 : index
    %c0_13 = arith.constant 0 : index
    %18 = vector.load %arg6[%c0_12, %c0_13] : memref<8x128xf32, #tpu.memory_space<vmem>>, vector<8x128xf32>
    tpu.vector_store %arg6[%c0_12, %c0_13], %17 {strides = array<i32>} : memref<8x128xf32, #tpu.memory_space<vmem>>, vector<8x128xf32>,
    return
  }
  func.func @transform_0(%arg0: i32) -> (i32, i32) {
    %c0_i32 = arith.constant 0 : i32
    %c0_i32_0 = arith.constant 0 : i32
    return %arg0, %c0_i32 : i32, i32
  }
  func.func @transform_1(%arg0: i32) -> (i32, i32) {
    %c0_i32 = arith.constant 0 : i32
    %c0_i32_0 = arith.constant 0 : i32
    %c0_i32_1 = arith.constant 0 : i32
    return %c0_i32, %c0_i32_0 : i32, i32
  }
  func.func @transform_2(%arg0: i32) -> (i32, i32) {
    %c0_i32 = arith.constant 0 : i32
    %c0_i32_0 = arith.constant 0 : i32
    %c0_i32_1 = arith.constant 0 : i32
    return %c0_i32, %c0_i32_0 : i32, i32
  }
  func.func @transform_3(%arg0: i32) -> (i32, i32) {
    %c0_i32 = arith.constant 0 : i32
    %c0_i32_0 = arith.constant 0 : i32
    %c0_i32_1 = arith.constant 0 : i32
    return %c0_i32, %c0_i32_0 : i32, i32
  }
  func.func @transform_4(%arg0: i32) -> (i32, i32) {
    %c0_i32 = arith.constant 0 : i32
    %c0_i32_0 = arith.constant 0 : i32
    %c0_i32_1 = arith.constant 0 : i32
    return %c0_i32, %c0_i32_0 : i32, i32
  }
  func.func @transform_5(%arg0: i32) -> (i32, i32) {
    %c0_i32 = arith.constant 0 : i32
    %c0_i32_0 = arith.constant 0 : i32
    return %arg0, %c0_i32 : i32, i32
  }
}

</mosaic_0001>

<llo_original>
// kernel: aug_wrapper_forward.1
$region0: #{aug_wrapper_forward.1}
  #allocation0 [shape = 'u32[]', space=smem, size = 0x4, offset = 0x4, fixed_abs, tag = 'smem constant byte address 0x4 - core index']
  #allocation1 [shape = 'u32[144,128]{1,0:T(1,128)}', space=vmem, size = 0x12000, scoped, tag = 'internal scratch']
  %s0 = inlined_call_operand.vmem [shape: f32[8,2048], index: 0, kind: input, shape index: {}]
  %s1 = inlined_call_operand.vmem [shape: bf16[2048,128], index: 1, kind: input, shape index: {}]
  %s2 = inlined_call_operand.vmem [shape: f32[1,128], index: 2, kind: input, shape index: {}]
  %s3 = inlined_call_operand.vmem [shape: bf16[128,128], index: 3, kind: input, shape index: {}]
  %s4 = inlined_call_operand.vmem [shape: f32[1,128], index: 4, kind: input, shape index: {}]
  %s5 = inlined_call_operand.vmem [shape: f32[8,128], index: 5, kind: output, shape index: {}]
  %s6 = sld [smem:[#allocation0]]
  $region30: #{aug_wrapper_forward.1} parent=0
    _
  %s8 = ssub.s32 1, %s6
  %s9 = scalar_select 0, %s8, %s6
  // Predicated region
  $region2: #{aug_wrapper_forward.1} parent=0 // pred_check
    _
  $region3: #{aug_wrapper_forward.1} parent=0 // pred_check_branch
    %11 = sbr.rel (0) target = $region5
  $region4: #{aug_wrapper_forward.1} parent=0 // pred_region
    _
  $region5: #{aug_wrapper_forward.1} parent=0 // pred_fallthru
    _
  // Predicated region
  $region6: #{aug_wrapper_forward.1} parent=0 // pred_check
    _
  $region7: #{aug_wrapper_forward.1} parent=0 // pred_check_branch
    %13 = sbr.rel (0) target = $region9
  $region8: #{aug_wrapper_forward.1} parent=0 // pred_region
    _
  $region9: #{aug_wrapper_forward.1} parent=0 // pred_fallthru
    _
  // Predicated region
  $region10: #{aug_wrapper_forward.1} parent=0 // pred_check
    _
  $region11: #{aug_wrapper_forward.1} parent=0 // pred_check_branch
    %15 = sbr.rel (0) target = $region13
  $region12: #{aug_wrapper_forward.1} parent=0 // pred_region
    _
  $region13: #{aug_wrapper_forward.1} parent=0 // pred_fallthru
    _
  // Predicated region
  $region14: #{aug_wrapper_forward.1} parent=0 // pred_check
    _
  $region15: #{aug_wrapper_forward.1} parent=0 // pred_check_branch
    %17 = sbr.rel (0) target = $region17
  $region16: #{aug_wrapper_forward.1} parent=0 // pred_region
    _
  $region17: #{aug_wrapper_forward.1} parent=0 // pred_fallthru
    _
  // Predicated region
  $region18: #{aug_wrapper_forward.1} parent=0 // pred_check
    _
  $region19: #{aug_wrapper_forward.1} parent=0 // pred_check_branch
    %19 = sbr.rel (0) target = $region21
  $region20: #{aug_wrapper_forward.1} parent=0 // pred_region
    _
  $region21: #{aug_wrapper_forward.1} parent=0 // pred_fallthru
    _
  %v21 = vld [vmem:[%s0] sm:$0xff]
  %v22 = vld [vmem:[%s0 + $0x8] sm:$0xff]
  %v23 = vld [vmem:[%s0 + $0x10] sm:$0xff]
  %v24 = vld [vmem:[%s0 + $0x18] sm:$0xff]
  %v25 = vld [vmem:[%s0 + $0x20] sm:$0xff]
  %v26 = vld [vmem:[%s0 + $0x28] sm:$0xff]
  %v27 = vld [vmem:[%s0 + $0x30] sm:$0xff]
  %v28 = vld [vmem:[%s0 + $0x38] sm:$0xff]
  %v29 = vld [vmem:[%s0 + $0x40] sm:$0xff]
  %v30 = vld [vmem:[%s0 + $0x48] sm:$0xff]
  %v31 = vld [vmem:[%s0 + $0x50] sm:$0xff]
  %v32 = vld [vmem:[%s0 + $0x58] sm:$0xff]
  %v33 = vld [vmem:[%s0 + $0x60] sm:$0xff]
  %v34 = vld [vmem:[%s0 + $0x68] sm:$0xff]
  %v35 = vld [vmem:[%s0 + $0x70] sm:$0xff]
  %v36 = vld [vmem:[%s0 + $0x78] sm:$0xff]
  %v37 = vpack.c.bf16 %v21, %v21
  %v38 = vpack.c.bf16 %v22, %v22
  %v39 = vpack.c.bf16 %v23, %v23
  %v40 = vpack.c.bf16 %v24, %v24
  %v41 = vpack.c.bf16 %v25, %v25
  %v42 = vpack.c.bf16 %v26, %v26
  %v43 = vpack.c.bf16 %v27, %v27
  %v44 = vpack.c.bf16 %v28, %v28
  %v45 = vpack.c.bf16 %v29, %v29
  %v46 = vpack.c.bf16 %v30, %v30
  %v47 = vpack.c.bf16 %v31, %v31
  %v48 = vpack.c.bf16 %v32, %v32
  %v49 = vpack.c.bf16 %v33, %v33
  %v50 = vpack.c.bf16 %v34, %v34
  %v51 = vpack.c.bf16 %v35, %v35
  %v52 = vpack.c.bf16 %v36, %v36
  %v53 = vld [vmem:[%s1] sm:$0xf]
  %v54 = vld [vmem:[%s1 + $0x4] sm:$0xf]
  %v55 = vld [vmem:[%s1 + $0x8] sm:$0xf]
  %v56 = vld [vmem:[%s1 + $0xc] sm:$0xf]
  %v57 = vld [vmem:[%s1 + $0x10] sm:$0xf]
  %v58 = vld [vmem:[%s1 + $0x14] sm:$0xf]
  %v59 = vld [vmem:[%s1 + $0x18] sm:$0xf]
  %v60 = vld [vmem:[%s1 + $0x1c] sm:$0xf]
  %v61 = vld [vmem:[%s1 + $0x20] sm:$0xf]
  %v62 = vld [vmem:[%s1 + $0x24] sm:$0xf]
  %v63 = vld [vmem:[%s1 + $0x28] sm:$0xf]
  %v64 = vld [vmem:[%s1 + $0x2c] sm:$0xf]
  %v65 = vld [vmem:[%s1 + $0x30] sm:$0xf]
  %v66 = vld [vmem:[%s1 + $0x34] sm:$0xf]
  %v67 = vld [vmem:[%s1 + $0x38] sm:$0xf]
  %v68 = vld [vmem:[%s1 + $0x3c] sm:$0xf]
  %v69 = vld [vmem:[%s1 + $0x40] sm:$0xf]
  %v70 = vld [vmem:[%s1 + $0x44] sm:$0xf]
  %v71 = vld [vmem:[%s1 + $0x48] sm:$0xf]
  %v72 = vld [vmem:[%s1 + $0x4c] sm:$0xf]
  %v73 = vld [vmem:[%s1 + $0x50] sm:$0xf]
  %v74 = vld [vmem:[%s1 + $0x54] sm:$0xf]
  %v75 = vld [vmem:[%s1 + $0x58] sm:$0xf]
  %v76 = vld [vmem:[%s1 + $0x5c] sm:$0xf]
  %v77 = vld [vmem:[%s1 + $0x60] sm:$0xf]
  %v78 = vld [vmem:[%s1 + $0x64] sm:$0xf]
  %v79 = vld [vmem:[%s1 + $0x68] sm:$0xf]
  %v80 = vld [vmem:[%s1 + $0x6c] sm:$0xf]
  %v81 = vld [vmem:[%s1 + $0x70] sm:$0xf]
  %v82 = vld [vmem:[%s1 + $0x74] sm:$0xf]
  %v83 = vld [vmem:[%s1 + $0x78] sm:$0xf]
  %v84 = vld [vmem:[%s1 + $0x7c] sm:$0xf]
  %v85 = vld [vmem:[%s1 + $0x80] sm:$0xf]
  %v86 = vld [vmem:[%s1 + $0x84] sm:$0xf]
  %v87 = vld [vmem:[%s1 + $0x88] sm:$0xf]
  %v88 = vld [vmem:[%s1 + $0x8c] sm:$0xf]
  %v89 = vld [vmem:[%s1 + $0x90] sm:$0xf]
  %v90 = vld [vmem:[%s1 + $0x94] sm:$0xf]
  %v91 = vld [vmem:[%s1 + $0x98] sm:$0xf]
  %v92 = vld [vmem:[%s1 + $0x9c] sm:$0xf]
  %v93 = vld [vmem:[%s1 + $0xa0] sm:$0xf]
  %v94 = vld [vmem:[%s1 + $0xa4] sm:$0xf]
  %v95 = vld [vmem:[%s1 + $0xa8] sm:$0xf]
  %v96 = vld [vmem:[%s1 + $0xac] sm:$0xf]
  %v97 = vld [vmem:[%s1 + $0xb0] sm:$0xf]
  %v98 = vld [vmem:[%s1 + $0xb4] sm:$0xf]
  %v99 = vld [vmem:[%s1 + $0xb8] sm:$0xf]
  %v100 = vld [vmem:[%s1 + $0xbc] sm:$0xf]
  %v101 = vld [vmem:[%s1 + $0xc0] sm:$0xf]
  %v102 = vld [vmem:[%s1 + $0xc4] sm:$0xf]
  %v103 = vld [vmem:[%s1 + $0xc8] sm:$0xf]
  %v104 = vld [vmem:[%s1 + $0xcc] sm:$0xf]
  %v105 = vld [vmem:[%s1 + $0xd0] sm:$0xf]
  %v106 = vld [vmem:[%s1 + $0xd4] sm:$0xf]
  %v107 = vld [vmem:[%s1 + $0xd8] sm:$0xf]
  %v108 = vld [vmem:[%s1 + $0xdc] sm:$0xf]
  %v109 = vld [vmem:[%s1 + $0xe0] sm:$0xf]
  %v110 = vld [vmem:[%s1 + $0xe4] sm:$0xf]
  %v111 = vld [vmem:[%s1 + $0xe8] sm:$0xf]
  %v112 = vld [vmem:[%s1 + $0xec] sm:$0xf]
  %v113 = vld [vmem:[%s1 + $0xf0] sm:$0xf]
  %v114 = vld [vmem:[%s1 + $0xf4] sm:$0xf]
  %v115 = vld [vmem:[%s1 + $0xf8] sm:$0xf]
  %v116 = vld [vmem:[%s1 + $0xfc] sm:$0xf]
  %v117 = vld [vmem:[%s1 + $0x100] sm:$0xf]
  %v118 = vld [vmem:[%s1 + $0x104] sm:$0xf]
  %v119 = vld [vmem:[%s1 + $0x108] sm:$0xf]
  %v120 = vld [vmem:[%s1 + $0x10c] sm:$0xf]
  %v121 = vld [vmem:[%s1 + $0x110] sm:$0xf]
  %v122 = vld [vmem:[%s1 + $0x114] sm:$0xf]
  %v123 = vld [vmem:[%s1 + $0x118] sm:$0xf]
  %v124 = vld [vmem:[%s1 + $0x11c] sm:$0xf]
  %v125 = vld [vmem:[%s1 + $0x120] sm:$0xf]
  %v126 = vld [vmem:[%s1 + $0x124] sm:$0xf]
  %v127 = vld [vmem:[%s1 + $0x128] sm:$0xf]
  %v128 = vld [vmem:[%s1 + $0x12c] sm:$0xf]
  %v129 = vld [vmem:[%s1 + $0x130] sm:$0xf]
  %v130 = vld [vmem:[%s1 + $0x134] sm:$0xf]
  %v131 = vld [vmem:[%s1 + $0x138] sm:$0xf]
  %v132 = vld [vmem:[%s1 + $0x13c] sm:$0xf]
  %v133 = vld [vmem:[%s1 + $0x140] sm:$0xf]
  %v134 = vld [vmem:[%s1 + $0x144] sm:$0xf]
  %v135 = vld [vmem:[%s1 + $0x148] sm:$0xf]
  %v136 = vld [vmem:[%s1 + $0x14c] sm:$0xf]
  %v137 = vld [vmem:[%s1 + $0x150] sm:$0xf]
  %v138 = vld [vmem:[%s1 + $0x154] sm:$0xf]
  %v139 = vld [vmem:[%s1 + $0x158] sm:$0xf]
  %v140 = vld [vmem:[%s1 + $0x15c] sm:$0xf]
  %v141 = vld [vmem:[%s1 + $0x160] sm:$0xf]
  %v142 = vld [vmem:[%s1 + $0x164] sm:$0xf]
  %v143 = vld [vmem:[%s1 + $0x168] sm:$0xf]
  %v144 = vld [vmem:[%s1 + $0x16c] sm:$0xf]
  %v145 = vld [vmem:[%s1 + $0x170] sm:$0xf]
  %v146 = vld [vmem:[%s1 + $0x174] sm:$0xf]
  %v147 = vld [vmem:[%s1 + $0x178] sm:$0xf]
  %v148 = vld [vmem:[%s1 + $0x17c] sm:$0xf]
  %v149 = vld [vmem:[%s1 + $0x180] sm:$0xf]
  %v150 = vld [vmem:[%s1 + $0x184] sm:$0xf]
  %v151 = vld [vmem:[%s1 + $0x188] sm:$0xf]
  %v152 = vld [vmem:[%s1 + $0x18c] sm:$0xf]
  %v153 = vld [vmem:[%s1 + $0x190] sm:$0xf]
  %v154 = vld [vmem:[%s1 + $0x194] sm:$0xf]
  %v155 = vld [vmem:[%s1 + $0x198] sm:$0xf]
  %v156 = vld [vmem:[%s1 + $0x19c] sm:$0xf]
  %v157 = vld [vmem:[%s1 + $0x1a0] sm:$0xf]
  %v158 = vld [vmem:[%s1 + $0x1a4] sm:$0xf]
  %v159 = vld [vmem:[%s1 + $0x1a8] sm:$0xf]
  %v160 = vld [vmem:[%s1 + $0x1ac] sm:$0xf]
  %v161 = vld [vmem:[%s1 + $0x1b0] sm:$0xf]
  %v162 = vld [vmem:[%s1 + $0x1b4] sm:$0xf]
  %v163 = vld [vmem:[%s1 + $0x1b8] sm:$0xf]
  %v164 = vld [vmem:[%s1 + $0x1bc] sm:$0xf]
  %v165 = vld [vmem:[%s1 + $0x1c0] sm:$0xf]
  %v166 = vld [vmem:[%s1 + $0x1c4] sm:$0xf]
  %v167 = vld [vmem:[%s1 + $0x1c8] sm:$0xf]
  %v168 = vld [vmem:[%s1 + $0x1cc] sm:$0xf]
  %v169 = vld [vmem:[%s1 + $0x1d0] sm:$0xf]
  %v170 = vld [vmem:[%s1 + $0x1d4] sm:$0xf]
  %v171 = vld [vmem:[%s1 + $0x1d8] sm:$0xf]
  %v172 = vld [vmem:[%s1 + $0x1dc] sm:$0xf]
  %v173 = vld [vmem:[%s1 + $0x1e0] sm:$0xf]
  %v174 = vld [vmem:[%s1 + $0x1e4] sm:$0xf]
  %v175 = vld [vmem:[%s1 + $0x1e8] sm:$0xf]
  %v176 = vld [vmem:[%s1 + $0x1ec] sm:$0xf]
  %v177 = vld [vmem:[%s1 + $0x1f0] sm:$0xf]
  %v178 = vld [vmem:[%s1 + $0x1f4] sm:$0xf]
  %v179 = vld [vmem:[%s1 + $0x1f8] sm:$0xf]
  %v180 = vld [vmem:[%s1 + $0x1fc] sm:$0xf]
  %v181 = vld [vmem:[%s1 + $0x200] sm:$0xf]
  %v182 = vld [vmem:[%s1 + $0x204] sm:$0xf]
  %v183 = vld [vmem:[%s1 + $0x208] sm:$0xf]
  %v184 = vld [vmem:[%s1 + $0x20c] sm:$0xf]
  %v185 = vld [vmem:[%s1 + $0x210] sm:$0xf]
  %v186 = vld [vmem:[%s1 + $0x214] sm:$0xf]
  %v187 = vld [vmem:[%s1 + $0x218] sm:$0xf]
  %v188 = vld [vmem:[%s1 + $0x21c] sm:$0xf]
  %v189 = vld [vmem:[%s1 + $0x220] sm:$0xf]
  %v190 = vld [vmem:[%s1 + $0x224] sm:$0xf]
  %v191 = vld [vmem:[%s1 + $0x228] sm:$0xf]
  %v192 = vld [vmem:[%s1 + $0x22c] sm:$0xf]
  %v193 = vld [vmem:[%s1 + $0x230] sm:$0xf]
  %v194 = vld [vmem:[%s1 + $0x234] sm:$0xf]
  %v195 = vld [vmem:[%s1 + $0x238] sm:$0xf]
  %v196 = vld [vmem:[%s1 + $0x23c] sm:$0xf]
  %v197 = vld [vmem:[%s1 + $0x240] sm:$0xf]
  %v198 = vld [vmem:[%s1 + $0x244] sm:$0xf]
  %v199 = vld [vmem:[%s1 + $0x248] sm:$0xf]
  %v200 = vld [vmem:[%s1 + $0x24c] sm:$0xf]
  %v201 = vld [vmem:[%s1 + $0x250] sm:$0xf]
  %v202 = vld [vmem:[%s1 + $0x254] sm:$0xf]
  %v203 = vld [vmem:[%s1 + $0x258] sm:$0xf]
  %v204 = vld [vmem:[%s1 + $0x25c] sm:$0xf]
  %v205 = vld [vmem:[%s1 + $0x260] sm:$0xf]
  %v206 = vld [vmem:[%s1 + $0x264] sm:$0xf]
  %v207 = vld [vmem:[%s1 + $0x268] sm:$0xf]
  %v208 = vld [vmem:[%s1 + $0x26c] sm:$0xf]
  %v209 = vld [vmem:[%s1 + $0x270] sm:$0xf]
  %v210 = vld [vmem:[%s1 + $0x274] sm:$0xf]
  %v211 = vld [vmem:[%s1 + $0x278] sm:$0xf]
  %v212 = vld [vmem:[%s1 + $0x27c] sm:$0xf]
  %v213 = vld [vmem:[%s1 + $0x280] sm:$0xf]
  %v214 = vld [vmem:[%s1 + $0x284] sm:$0xf]
  %v215 = vld [vmem:[%s1 + $0x288] sm:$0xf]
  %v216 = vld [vmem:[%s1 + $0x28c] sm:$0xf]
  %v217 = vld [vmem:[%s1 + $0x290] sm:$0xf]
  %v218 = vld [vmem:[%s1 + $0x294] sm:$0xf]
  %v219 = vld [vmem:[%s1 + $0x298] sm:$0xf]
  %v220 = vld [vmem:[%s1 + $0x29c] sm:$0xf]
  %v221 = vld [vmem:[%s1 + $0x2a0] sm:$0xf]
  %v222 = vld [vmem:[%s1 + $0x2a4] sm:$0xf]
  %v223 = vld [vmem:[%s1 + $0x2a8] sm:$0xf]
  %v224 = vld [vmem:[%s1 + $0x2ac] sm:$0xf]
  %v225 = vld [vmem:[%s1 + $0x2b0] sm:$0xf]
  %v226 = vld [vmem:[%s1 + $0x2b4] sm:$0xf]
  %v227 = vld [vmem:[%s1 + $0x2b8] sm:$0xf]
  %v228 = vld [vmem:[%s1 + $0x2bc] sm:$0xf]
  %v229 = vld [vmem:[%s1 + $0x2c0] sm:$0xf]
  %v230 = vld [vmem:[%s1 + $0x2c4] sm:$0xf]
  %v231 = vld [vmem:[%s1 + $0x2c8] sm:$0xf]
  %v232 = vld [vmem:[%s1 + $0x2cc] sm:$0xf]
  %v233 = vld [vmem:[%s1 + $0x2d0] sm:$0xf]
  %v234 = vld [vmem:[%s1 + $0x2d4] sm:$0xf]
  %v235 = vld [vmem:[%s1 + $0x2d8] sm:$0xf]
  %v236 = vld [vmem:[%s1 + $0x2dc] sm:$0xf]
  %v237 = vld [vmem:[%s1 + $0x2e0] sm:$0xf]
  %v238 = vld [vmem:[%s1 + $0x2e4] sm:$0xf]
  %v239 = vld [vmem:[%s1 + $0x2e8] sm:$0xf]
  %v240 = vld [vmem:[%s1 + $0x2ec] sm:$0xf]
  %v241 = vld [vmem:[%s1 + $0x2f0] sm:$0xf]
  %v242 = vld [vmem:[%s1 + $0x2f4] sm:$0xf]
  %v243 = vld [vmem:[%s1 + $0x2f8] sm:$0xf]
  %v244 = vld [vmem:[%s1 + $0x2fc] sm:$0xf]
  %v245 = vld [vmem:[%s1 + $0x300] sm:$0xf]
  %v246 = vld [vmem:[%s1 + $0x304] sm:$0xf]
  %v247 = vld [vmem:[%s1 + $0x308] sm:$0xf]
  %v248 = vld [vmem:[%s1 + $0x30c] sm:$0xf]
  %v249 = vld [vmem:[%s1 + $0x310] sm:$0xf]
  %v250 = vld [vmem:[%s1 + $0x314] sm:$0xf]
  %v251 = vld [vmem:[%s1 + $0x318] sm:$0xf]
  %v252 = vld [vmem:[%s1 + $0x31c] sm:$0xf]
  %v253 = vld [vmem:[%s1 + $0x320] sm:$0xf]
  %v254 = vld [vmem:[%s1 + $0x324] sm:$0xf]
  %v255 = vld [vmem:[%s1 + $0x328] sm:$0xf]
  %v256 = vld [vmem:[%s1 + $0x32c] sm:$0xf]
  %v257 = vld [vmem:[%s1 + $0x330] sm:$0xf]
  %v258 = vld [vmem:[%s1 + $0x334] sm:$0xf]
  %v259 = vld [vmem:[%s1 + $0x338] sm:$0xf]
  %v260 = vld [vmem:[%s1 + $0x33c] sm:$0xf]
  %v261 = vld [vmem:[%s1 + $0x340] sm:$0xf]
  %v262 = vld [vmem:[%s1 + $0x344] sm:$0xf]
  %v263 = vld [vmem:[%s1 + $0x348] sm:$0xf]
  %v264 = vld [vmem:[%s1 + $0x34c] sm:$0xf]
  %v265 = vld [vmem:[%s1 + $0x350] sm:$0xf]
  %v266 = vld [vmem:[%s1 + $0x354] sm:$0xf]
  %v267 = vld [vmem:[%s1 + $0x358] sm:$0xf]
  %v268 = vld [vmem:[%s1 + $0x35c] sm:$0xf]
  %v269 = vld [vmem:[%s1 + $0x360] sm:$0xf]
  %v270 = vld [vmem:[%s1 + $0x364] sm:$0xf]
  %v271 = vld [vmem:[%s1 + $0x368] sm:$0xf]
  %v272 = vld [vmem:[%s1 + $0x36c] sm:$0xf]
  %v273 = vld [vmem:[%s1 + $0x370] sm:$0xf]
  %v274 = vld [vmem:[%s1 + $0x374] sm:$0xf]
  %v275 = vld [vmem:[%s1 + $0x378] sm:$0xf]
  %v276 = vld [vmem:[%s1 + $0x37c] sm:$0xf]
  %v277 = vld [vmem:[%s1 + $0x380] sm:$0xf]
  %v278 = vld [vmem:[%s1 + $0x384] sm:$0xf]
  %v279 = vld [vmem:[%s1 + $0x388] sm:$0xf]
  %v280 = vld [vmem:[%s1 + $0x38c] sm:$0xf]
  %v281 = vld [vmem:[%s1 + $0x390] sm:$0xf]
  %v282 = vld [vmem:[%s1 + $0x394] sm:$0xf]
  %v283 = vld [vmem:[%s1 + $0x398] sm:$0xf]
  %v284 = vld [vmem:[%s1 + $0x39c] sm:$0xf]
  %v285 = vld [vmem:[%s1 + $0x3a0] sm:$0xf]
  %v286 = vld [vmem:[%s1 + $0x3a4] sm:$0xf]
  %v287 = vld [vmem:[%s1 + $0x3a8] sm:$0xf]
  %v288 = vld [vmem:[%s1 + $0x3ac] sm:$0xf]
  %v289 = vld [vmem:[%s1 + $0x3b0] sm:$0xf]
  %v290 = vld [vmem:[%s1 + $0x3b4] sm:$0xf]
  %v291 = vld [vmem:[%s1 + $0x3b8] sm:$0xf]
  %v292 = vld [vmem:[%s1 + $0x3bc] sm:$0xf]
  %v293 = vld [vmem:[%s1 + $0x3c0] sm:$0xf]
  %v294 = vld [vmem:[%s1 + $0x3c4] sm:$0xf]
  %v295 = vld [vmem:[%s1 + $0x3c8] sm:$0xf]
  %v296 = vld [vmem:[%s1 + $0x3cc] sm:$0xf]
  %v297 = vld [vmem:[%s1 + $0x3d0] sm:$0xf]
  %v298 = vld [vmem:[%s1 + $0x3d4] sm:$0xf]
  %v299 = vld [vmem:[%s1 + $0x3d8] sm:$0xf]
  %v300 = vld [vmem:[%s1 + $0x3dc] sm:$0xf]
  %v301 = vld [vmem:[%s1 + $0x3e0] sm:$0xf]
  %v302 = vld [vmem:[%s1 + $0x3e4] sm:$0xf]
  %v303 = vld [vmem:[%s1 + $0x3e8] sm:$0xf]
  %v304 = vld [vmem:[%s1 + $0x3ec] sm:$0xf]
  %v305 = vld [vmem:[%s1 + $0x3f0] sm:$0xf]
  %v306 = vld [vmem:[%s1 + $0x3f4] sm:$0xf]
  %v307 = vld [vmem:[%s1 + $0x3f8] sm:$0xf]
  %v308 = vld [vmem:[%s1 + $0x3fc] sm:$0xf]
  %v309 = vld [vmem:[%s2] sm:$0x1]
  %v311 = vlaneseq
  %v312 = vshrl.u32 %v311, 7
  %v313 = vsub.s32 0, %v312
  %v314 = vrot.slane %v309, %v313
  %v572 = vunpack.c.l.b16 %v53
  %v573 = vunpack.c.l.b16 %v54
  %v574 = vunpack.c.l.b16 %v55
  %v575 = vunpack.c.l.b16 %v56
  %v576 = vunpack.c.l.b16 %v57
  %v577 = vunpack.c.l.b16 %v58
  %v578 = vunpack.c.l.b16 %v59
  %v579 = vunpack.c.l.b16 %v60
  %v580 = vunpack.c.l.b16 %v61
  %v581 = vunpack.c.l.b16 %v62
  %v582 = vunpack.c.l.b16 %v63
  %v583 = vunpack.c.l.b16 %v64
  %v584 = vunpack.c.l.b16 %v65
  %v585 = vunpack.c.l.b16 %v66
  %v586 = vunpack.c.l.b16 %v67
  %v587 = vunpack.c.l.b16 %v68
  %v588 = vunpack.c.l.b16 %v69
  %v589 = vunpack.c.l.b16 %v70
  %v590 = vunpack.c.l.b16 %v71
  %v591 = vunpack.c.l.b16 %v72
  %v592 = vunpack.c.l.b16 %v73
  %v593 = vunpack.c.l.b16 %v74
  %v594 = vunpack.c.l.b16 %v75
  %v595 = vunpack.c.l.b16 %v76
  %v596 = vunpack.c.l.b16 %v77
  %v597 = vunpack.c.l.b16 %v78
  %v598 = vunpack.c.l.b16 %v79
  %v599 = vunpack.c.l.b16 %v80
  %v600 = vunpack.c.l.b16 %v81
  %v601 = vunpack.c.l.b16 %v82
  %v602 = vunpack.c.l.b16 %v83
  %v603 = vunpack.c.l.b16 %v84
  %v604 = vunpack.c.l.b16 %v85
  %v605 = vunpack.c.l.b16 %v86
  %v606 = vunpack.c.l.b16 %v87
  %v607 = vunpack.c.l.b16 %v88
  %v608 = vunpack.c.l.b16 %v89
  %v609 = vunpack.c.l.b16 %v90
  %v610 = vunpack.c.l.b16 %v91
  %v611 = vunpack.c.l.b16 %v92
  %v612 = vunpack.c.l.b16 %v93
  %v613 = vunpack.c.l.b16 %v94
  %v614 = vunpack.c.l.b16 %v95
  %v615 = vunpack.c.l.b16 %v96
  %v616 = vunpack.c.l.b16 %v97
  %v617 = vunpack.c.l.b16 %v98
  %v618 = vunpack.c.l.b16 %v99
  %v619 = vunpack.c.l.b16 %v100
  %v620 = vunpack.c.l.b16 %v101
  %v621 = vunpack.c.l.b16 %v102
  %v622 = vunpack.c.l.b16 %v103
  %v623 = vunpack.c.l.b16 %v104
  %v624 = vunpack.c.l.b16 %v105
  %v625 = vunpack.c.l.b16 %v106
  %v626 = vunpack.c.l.b16 %v107
  %v627 = vunpack.c.l.b16 %v108
  %v628 = vunpack.c.l.b16 %v109
  %v629 = vunpack.c.l.b16 %v110
  %v630 = vunpack.c.l.b16 %v111
  %v631 = vunpack.c.l.b16 %v112
  %v632 = vunpack.c.l.b16 %v113
  %v633 = vunpack.c.l.b16 %v114
  %v634 = vunpack.c.l.b16 %v115
  %v635 = vunpack.c.l.b16 %v116
  %v636 = vunpack.c.l.b16 %v117
  %v637 = vunpack.c.l.b16 %v118
  %v638 = vunpack.c.l.b16 %v119
  %v639 = vunpack.c.l.b16 %v120
  %v640 = vunpack.c.l.b16 %v121
  %v641 = vunpack.c.l.b16 %v122
  %v642 = vunpack.c.l.b16 %v123
  %v643 = vunpack.c.l.b16 %v124
  %v644 = vunpack.c.l.b16 %v125
  %v645 = vunpack.c.l.b16 %v126
  %v646 = vunpack.c.l.b16 %v127
  %v647 = vunpack.c.l.b16 %v128
  %v648 = vunpack.c.l.b16 %v129
  %v649 = vunpack.c.l.b16 %v130
  %v650 = vunpack.c.l.b16 %v131
  %v651 = vunpack.c.l.b16 %v132
  %v652 = vunpack.c.l.b16 %v133
  %v653 = vunpack.c.l.b16 %v134
  %v654 = vunpack.c.l.b16 %v135
  %v655 = vunpack.c.l.b16 %v136
  %v656 = vunpack.c.l.b16 %v137
  %v657 = vunpack.c.l.b16 %v138
  %v658 = vunpack.c.l.b16 %v139
  %v659 = vunpack.c.l.b16 %v140
  %v660 = vunpack.c.l.b16 %v141
  %v661 = vunpack.c.l.b16 %v142
  %v662 = vunpack.c.l.b16 %v143
  %v663 = vunpack.c.l.b16 %v144
  %v664 = vunpack.c.l.b16 %v145
  %v665 = vunpack.c.l.b16 %v146
  %v666 = vunpack.c.l.b16 %v147
  %v667 = vunpack.c.l.b16 %v148
  %v668 = vunpack.c.l.b16 %v149
  %v669 = vunpack.c.l.b16 %v150
  %v670 = vunpack.c.l.b16 %v151
  %v671 = vunpack.c.l.b16 %v152
  %v672 = vunpack.c.l.b16 %v153
  %v673 = vunpack.c.l.b16 %v154
  %v674 = vunpack.c.l.b16 %v155
  %v675 = vunpack.c.l.b16 %v156
  %v676 = vunpack.c.l.b16 %v157
  %v677 = vunpack.c.l.b16 %v158
  %v678 = vunpack.c.l.b16 %v159
  %v679 = vunpack.c.l.b16 %v160
  %v680 = vunpack.c.l.b16 %v161
  %v681 = vunpack.c.l.b16 %v162
  %v682 = vunpack.c.l.b16 %v163
  %v683 = vunpack.c.l.b16 %v164
  %v684 = vunpack.c.l.b16 %v165
  %v685 = vunpack.c.l.b16 %v166
  %v686 = vunpack.c.l.b16 %v167
  %v687 = vunpack.c.l.b16 %v168
  %v688 = vunpack.c.l.b16 %v169
  %v689 = vunpack.c.l.b16 %v170
  %v690 = vunpack.c.l.b16 %v171
  %v691 = vunpack.c.l.b16 %v172
  %v692 = vunpack.c.l.b16 %v173
  %v693 = vunpack.c.l.b16 %v174
  %v694 = vunpack.c.l.b16 %v175
  %v695 = vunpack.c.l.b16 %v176
  %v696 = vunpack.c.l.b16 %v177
  %v697 = vunpack.c.l.b16 %v178
  %v698 = vunpack.c.l.b16 %v179
  %v699 = vunpack.c.l.b16 %v180
  %v700 = vunpack.c.l.b16 %v181
  %v701 = vunpack.c.l.b16 %v182
  %v702 = vunpack.c.l.b16 %v183
  %v703 = vunpack.c.l.b16 %v184
  %v704 = vunpack.c.l.b16 %v185
  %v705 = vunpack.c.l.b16 %v186
  %v706 = vunpack.c.l.b16 %v187
  %v707 = vunpack.c.l.b16 %v188
  %v708 = vunpack.c.l.b16 %v189
  %v709 = vunpack.c.l.b16 %v190
  %v710 = vunpack.c.l.b16 %v191
  %v711 = vunpack.c.l.b16 %v192
  %v712 = vunpack.c.l.b16 %v193
  %v713 = vunpack.c.l.b16 %v194
  %v714 = vunpack.c.l.b16 %v195
  %v715 = vunpack.c.l.b16 %v196
  %v716 = vunpack.c.l.b16 %v197
  %v717 = vunpack.c.l.b16 %v198
  %v718 = vunpack.c.l.b16 %v199
  %v719 = vunpack.c.l.b16 %v200
  %v720 = vunpack.c.l.b16 %v201
  %v721 = vunpack.c.l.b16 %v202
  %v722 = vunpack.c.l.b16 %v203
  %v723 = vunpack.c.l.b16 %v204
  %v724 = vunpack.c.l.b16 %v205
  %v725 = vunpack.c.l.b16 %v206
  %v726 = vunpack.c.l.b16 %v207
  %v727 = vunpack.c.l.b16 %v208
  %v728 = vunpack.c.l.b16 %v209
  %v729 = vunpack.c.l.b16 %v210
  %v730 = vunpack.c.l.b16 %v211
  %v731 = vunpack.c.l.b16 %v212
  %v732 = vunpack.c.l.b16 %v213
  %v733 = vunpack.c.l.b16 %v214
  %v734 = vunpack.c.l.b16 %v215
  %v735 = vunpack.c.l.b16 %v216
  %v736 = vunpack.c.l.b16 %v217
  %v737 = vunpack.c.l.b16 %v218
  %v738 = vunpack.c.l.b16 %v219
  %v739 = vunpack.c.l.b16 %v220
  %v740 = vunpack.c.l.b16 %v221
  %v741 = vunpack.c.l.b16 %v222
  %v742 = vunpack.c.l.b16 %v223
  %v743 = vunpack.c.l.b16 %v224
  %v744 = vunpack.c.l.b16 %v225
  %v745 = vunpack.c.l.b16 %v226
  %v746 = vunpack.c.l.b16 %v227
  %v747 = vunpack.c.l.b16 %v228
  %v748 = vunpack.c.l.b16 %v229
  %v749 = vunpack.c.l.b16 %v230
  %v750 = vunpack.c.l.b16 %v231
  %v751 = vunpack.c.l.b16 %v232
  %v752 = vunpack.c.l.b16 %v233
  %v753 = vunpack.c.l.b16 %v234
  %v754 = vunpack.c.l.b16 %v235
  %v755 = vunpack.c.l.b16 %v236
  %v756 = vunpack.c.l.b16 %v237
  %v757 = vunpack.c.l.b16 %v238
  %v758 = vunpack.c.l.b16 %v239
  %v759 = vunpack.c.l.b16 %v240
  %v760 = vunpack.c.l.b16 %v241
  %v761 = vunpack.c.l.b16 %v242
  %v762 = vunpack.c.l.b16 %v243
  %v763 = vunpack.c.l.b16 %v244
  %v764 = vunpack.c.l.b16 %v245
  %v765 = vunpack.c.l.b16 %v246
  %v766 = vunpack.c.l.b16 %v247
  %v767 = vunpack.c.l.b16 %v248
  %v768 = vunpack.c.l.b16 %v249
  %v769 = vunpack.c.l.b16 %v250
  %v770 = vunpack.c.l.b16 %v251
  %v771 = vunpack.c.l.b16 %v252
  %v772 = vunpack.c.l.b16 %v253
  %v773 = vunpack.c.l.b16 %v254
  %v774 = vunpack.c.l.b16 %v255
  %v775 = vunpack.c.l.b16 %v256
  %v776 = vunpack.c.l.b16 %v257
  %v777 = vunpack.c.l.b16 %v258
  %v778 = vunpack.c.l.b16 %v259
  %v779 = vunpack.c.l.b16 %v260
  %v780 = vunpack.c.l.b16 %v261
  %v781 = vunpack.c.l.b16 %v262
  %v782 = vunpack.c.l.b16 %v263
  %v783 = vunpack.c.l.b16 %v264
  %v784 = vunpack.c.l.b16 %v265
  %v785 = vunpack.c.l.b16 %v266
  %v786 = vunpack.c.l.b16 %v267
  %v787 = vunpack.c.l.b16 %v268
  %v788 = vunpack.c.l.b16 %v269
  %v789 = vunpack.c.l.b16 %v270
  %v790 = vunpack.c.l.b16 %v271
  %v791 = vunpack.c.l.b16 %v272
  %v792 = vunpack.c.l.b16 %v273
  %v793 = vunpack.c.l.b16 %v274
  %v794 = vunpack.c.l.b16 %v275
  %v795 = vunpack.c.l.b16 %v276
  %v796 = vunpack.c.l.b16 %v277
  %v797 = vunpack.c.l.b16 %v278
  %v798 = vunpack.c.l.b16 %v279
  %v799 = vunpack.c.l.b16 %v280
  %v800 = vunpack.c.l.b16 %v281
  %v801 = vunpack.c.l.b16 %v282
  %v802 = vunpack.c.l.b16 %v283
  %v803 = vunpack.c.l.b16 %v284
  %v804 = vunpack.c.l.b16 %v285
  %v805 = vunpack.c.l.b16 %v286
  %v806 = vunpack.c.l.b16 %v287
  %v807 = vunpack.c.l.b16 %v288
  %v808 = vunpack.c.l.b16 %v289
  %v809 = vunpack.c.l.b16 %v290
  %v810 = vunpack.c.l.b16 %v291
  %v811 = vunpack.c.l.b16 %v292
  %v812 = vunpack.c.l.b16 %v293
  %v813 = vunpack.c.l.b16 %v294
  %v814 = vunpack.c.l.b16 %v295
  %v815 = vunpack.c.l.b16 %v296
  %v816 = vunpack.c.l.b16 %v297
  %v817 = vunpack.c.l.b16 %v298
  %v818 = vunpack.c.l.b16 %v299
  %v819 = vunpack.c.l.b16 %v300
  %v820 = vunpack.c.l.b16 %v301
  %v821 = vunpack.c.l.b16 %v302
  %v822 = vunpack.c.l.b16 %v303
  %v823 = vunpack.c.l.b16 %v304
  %v824 = vunpack.c.l.b16 %v305
  %v825 = vunpack.c.l.b16 %v306
  %v826 = vunpack.c.l.b16 %v307
  %v827 = vunpack.c.l.b16 %v308
  %v828 = vpack.c.b16 %v573, %v572
  %v829 = vpack.c.b16 %v575, %v574
  %v830 = vpack.c.b16 %v577, %v576
  %v831 = vpack.c.b16 %v579, %v578
  %v832 = vpack.c.b16 %v581, %v580
  %v833 = vpack.c.b16 %v583, %v582
  %v834 = vpack.c.b16 %v585, %v584
  %v835 = vpack.c.b16 %v587, %v586
  %v836 = vpack.c.b16 %v589, %v588
  %v837 = vpack.c.b16 %v591, %v590
  %v838 = vpack.c.b16 %v593, %v592
  %v839 = vpack.c.b16 %v595, %v594
  %v840 = vpack.c.b16 %v597, %v596
  %v841 = vpack.c.b16 %v599, %v598
  %v842 = vpack.c.b16 %v601, %v600
  %v843 = vpack.c.b16 %v603, %v602
  %v844 = vpack.c.b16 %v605, %v604
  %v845 = vpack.c.b16 %v607, %v606
  %v846 = vpack.c.b16 %v609, %v608
  %v847 = vpack.c.b16 %v611, %v610
  %v848 = vpack.c.b16 %v613, %v612
  %v849 = vpack.c.b16 %v615, %v614
  %v850 = vpack.c.b16 %v617, %v616
  %v851 = vpack.c.b16 %v619, %v618
  %v852 = vpack.c.b16 %v621, %v620
  %v853 = vpack.c.b16 %v623, %v622
  %v854 = vpack.c.b16 %v625, %v624
  %v855 = vpack.c.b16 %v627, %v626
  %v856 = vpack.c.b16 %v629, %v628
  %v857 = vpack.c.b16 %v631, %v630
  %v858 = vpack.c.b16 %v633, %v632
  %v859 = vpack.c.b16 %v635, %v634
  %v860 = vpack.c.b16 %v637, %v636
  %v861 = vpack.c.b16 %v639, %v638
  %v862 = vpack.c.b16 %v641, %v640
  %v863 = vpack.c.b16 %v643, %v642
  %v864 = vpack.c.b16 %v645, %v644
  %v865 = vpack.c.b16 %v647, %v646
  %v866 = vpack.c.b16 %v649, %v648
  %v867 = vpack.c.b16 %v651, %v650
  %v868 = vpack.c.b16 %v653, %v652
  %v869 = vpack.c.b16 %v655, %v654
  %v870 = vpack.c.b16 %v657, %v656
  %v871 = vpack.c.b16 %v659, %v658
  %v872 = vpack.c.b16 %v661, %v660
  %v873 = vpack.c.b16 %v663, %v662
  %v874 = vpack.c.b16 %v665, %v664
  %v875 = vpack.c.b16 %v667, %v666
  %v876 = vpack.c.b16 %v669, %v668
  %v877 = vpack.c.b16 %v671, %v670
  %v878 = vpack.c.b16 %v673, %v672
  %v879 = vpack.c.b16 %v675, %v674
  %v880 = vpack.c.b16 %v677, %v676
  %v881 = vpack.c.b16 %v679, %v678
  %v882 = vpack.c.b16 %v681, %v680
  %v883 = vpack.c.b16 %v683, %v682
  %v884 = vpack.c.b16 %v685, %v684
  %v885 = vpack.c.b16 %v687, %v686
  %v886 = vpack.c.b16 %v689, %v688
  %v887 = vpack.c.b16 %v691, %v690
  %v888 = vpack.c.b16 %v693, %v692
  %v889 = vpack.c.b16 %v695, %v694
  %v890 = vpack.c.b16 %v697, %v696
  %v891 = vpack.c.b16 %v699, %v698
  %v892 = vpack.c.b16 %v701, %v700
  %v893 = vpack.c.b16 %v703, %v702
  %v894 = vpack.c.b16 %v705, %v704
  %v895 = vpack.c.b16 %v707, %v706
  %v896 = vpack.c.b16 %v709, %v708
  %v897 = vpack.c.b16 %v711, %v710
  %v898 = vpack.c.b16 %v713, %v712
  %v899 = vpack.c.b16 %v715, %v714
  %v900 = vpack.c.b16 %v717, %v716
  %v901 = vpack.c.b16 %v719, %v718
  %v902 = vpack.c.b16 %v721, %v720
  %v903 = vpack.c.b16 %v723, %v722
  %v904 = vpack.c.b16 %v725, %v724
  %v905 = vpack.c.b16 %v727, %v726
  %v906 = vpack.c.b16 %v729, %v728
  %v907 = vpack.c.b16 %v731, %v730
  %v908 = vpack.c.b16 %v733, %v732
  %v909 = vpack.c.b16 %v735, %v734
  %v910 = vpack.c.b16 %v737, %v736
  %v911 = vpack.c.b16 %v739, %v738
  %v912 = vpack.c.b16 %v741, %v740
  %v913 = vpack.c.b16 %v743, %v742
  %v914 = vpack.c.b16 %v745, %v744
  %v915 = vpack.c.b16 %v747, %v746
  %v916 = vpack.c.b16 %v749, %v748
  %v917 = vpack.c.b16 %v751, %v750
  %v918 = vpack.c.b16 %v753, %v752
  %v919 = vpack.c.b16 %v755, %v754
  %v920 = vpack.c.b16 %v757, %v756
  %v921 = vpack.c.b16 %v759, %v758
  %v922 = vpack.c.b16 %v761, %v760
  %v923 = vpack.c.b16 %v763, %v762
  %v924 = vpack.c.b16 %v765, %v764
  %v925 = vpack.c.b16 %v767, %v766
  %v926 = vpack.c.b16 %v769, %v768
  %v927 = vpack.c.b16 %v771, %v770
  %v928 = vpack.c.b16 %v773, %v772
  %v929 = vpack.c.b16 %v775, %v774
  %v930 = vpack.c.b16 %v777, %v776
  %v931 = vpack.c.b16 %v779, %v778
  %v932 = vpack.c.b16 %v781, %v780
  %v933 = vpack.c.b16 %v783, %v782
  %v934 = vpack.c.b16 %v785, %v784
  %v935 = vpack.c.b16 %v787, %v786
  %v936 = vpack.c.b16 %v789, %v788
  %v937 = vpack.c.b16 %v791, %v790
  %v938 = vpack.c.b16 %v793, %v792
  %v939 = vpack.c.b16 %v795, %v794
  %v940 = vpack.c.b16 %v797, %v796
  %v941 = vpack.c.b16 %v799, %v798
  %v942 = vpack.c.b16 %v801, %v800
  %v943 = vpack.c.b16 %v803, %v802
  %v944 = vpack.c.b16 %v805, %v804
  %v945 = vpack.c.b16 %v807, %v806
  %v946 = vpack.c.b16 %v809, %v808
  %v947 = vpack.c.b16 %v811, %v810
  %v948 = vpack.c.b16 %v813, %v812
  %v949 = vpack.c.b16 %v815, %v814
  %v950 = vpack.c.b16 %v817, %v816
  %v951 = vpack.c.b16 %v819, %v818
  %v952 = vpack.c.b16 %v821, %v820
  %v953 = vpack.c.b16 %v823, %v822
  %v954 = vpack.c.b16 %v825, %v824
  %v955 = vpack.c.b16 %v827, %v826
  %1084 = vmatprep.subr.bf16.mxu0 0
  %1085 = vmatpush1.bf16.msra.mxu0 %v835
  %1086 = vmatprep.subr.bf16.mxu0 0
  %1087 = vmatpush1.bf16.msra.mxu0 %v834
  %1088 = vmatprep.subr.bf16.mxu0 0
  %1089 = vmatpush1.bf16.msra.mxu0 %v833
  %1090 = vmatprep.subr.bf16.mxu0 0
  %1091 = vmatpush1.bf16.msra.mxu0 %v832
  %1092 = vmatprep.subr.bf16.mxu0 0
  %1093 = vmatpush1.bf16.msra.mxu0 %v831
  %1094 = vmatprep.subr.bf16.mxu0 0
  %1095 = vmatpush1.bf16.msra.mxu0 %v830
  %1096 = vmatprep.subr.bf16.mxu0 0
  %1097 = vmatpush1.bf16.msra.mxu0 %v829
  %1098 = vmatprep.subr.bf16.mxu0 0
  %1099 = vmatpush1.bf16.msra.mxu0 %v828
  %1100 = vmatprep.subr.bf16.mxu0 0
  %1101 = vmatpush2.bf16.msra.mxu0 %v843
  %1102 = vmatprep.subr.bf16.mxu0 0
  %1103 = vmatpush2.bf16.msra.mxu0 %v842
  %1104 = vmatprep.subr.bf16.mxu0 0
  %1105 = vmatpush2.bf16.msra.mxu0 %v841
  %1106 = vmatprep.subr.bf16.mxu0 0
  %1107 = vmatpush2.bf16.msra.mxu0 %v840
  %1108 = vmatprep.subr.bf16.mxu0 0
  %1109 = vmatpush2.bf16.msra.mxu0 %v839
  %1110 = vmatprep.subr.bf16.mxu0 0
  %1111 = vmatpush2.bf16.msra.mxu0 %v838
  %1112 = vmatprep.subr.bf16.mxu0 0
  %1113 = vmatpush2.bf16.msra.mxu0 %v837
  %1114 = vmatprep.subr.bf16.mxu0 0
  %1115 = vmatpush2.bf16.msra.mxu0 %v836
  %1116 = vmatprep.mubr.bf16.mxu0 %v38
  %1117 = vmatmul.mubr.bf16.gmra.mxu0 %v37
  %v1118 = vpop.f32.mrf.mxu0
  %v1119 = vadd.f32 %v314, %v1118
  %v1120 = vpop.f32.mrf.mxu0
  %v1121 = vpop.f32.mrf.mxu0
  %v1122 = vpop.f32.mrf.mxu0
  %1123 = vdwg.mxu0
  %1124 = vmatprep.subr.bf16.mxu0 0
  %1125 = vmatpush1.bf16.msra.mxu0 %v851
  %1126 = vmatprep.subr.bf16.mxu0 0
  %1127 = vmatpush1.bf16.msra.mxu0 %v850
  %1128 = vmatprep.subr.bf16.mxu0 0
  %1129 = vmatpush1.bf16.msra.mxu0 %v849
  %1130 = vmatprep.subr.bf16.mxu0 0
  %1131 = vmatpush1.bf16.msra.mxu0 %v848
  %1132 = vmatprep.subr.bf16.mxu0 0
  %1133 = vmatpush1.bf16.msra.mxu0 %v847
  %1134 = vmatprep.subr.bf16.mxu0 0
  %1135 = vmatpush1.bf16.msra.mxu0 %v846
  %1136 = vmatprep.subr.bf16.mxu0 0
  %1137 = vmatpush1.bf16.msra.mxu0 %v845
  %1138 = vmatprep.subr.bf16.mxu0 0
  %1139 = vmatpush1.bf16.msra.mxu0 %v844
  %1140 = vmatprep.subr.bf16.mxu0 0
  %1141 = vmatpush2.bf16.msra.mxu0 %v859
  %1142 = vmatprep.subr.bf16.mxu0 0
  %1143 = vmatpush2.bf16.msra.mxu0 %v858
  %1144 = vmatprep.subr.bf16.mxu0 0
  %1145 = vmatpush2.bf16.msra.mxu0 %v857
  %1146 = vmatprep.subr.bf16.mxu0 0
  %1147 = vmatpush2.bf16.msra.mxu0 %v856
  %1148 = vmatprep.subr.bf16.mxu0 0
  %1149 = vmatpush2.bf16.msra.mxu0 %v855
  %1150 = vmatprep.subr.bf16.mxu0 0
  %1151 = vmatpush2.bf16.msra.mxu0 %v854
  %1152 = vmatprep.subr.bf16.mxu0 0
  %1153 = vmatpush2.bf16.msra.mxu0 %v853
  %1154 = vmatprep.subr.bf16.mxu0 0
  %1155 = vmatpush2.bf16.msra.mxu0 %v852
  %1156 = vmatprep.mubr.bf16.mxu0 %v40
  %1157 = vmatmul.mubr.bf16.gmra.mxu0 %v39
  %v1158 = vpop.f32.mrf.mxu0
  %v1159 = vadd.f32 %v1119, %v1158
  %v1160 = vpop.f32.mrf.mxu0
  %v1161 = vpop.f32.mrf.mxu0
  %v1162 = vpop.f32.mrf.mxu0
  %1163 = vdwg.mxu0
  %1164 = vmatprep.subr.bf16.mxu0 0
  %1165 = vmatpush1.bf16.msra.mxu0 %v867
  %1166 = vmatprep.subr.bf16.mxu0 0
  %1167 = vmatpush1.bf16.msra.mxu0 %v866
  %1168 = vmatprep.subr.bf16.mxu0 0
  %1169 = vmatpush1.bf16.msra.mxu0 %v865
  %1170 = vmatprep.subr.bf16.mxu0 0
  %1171 = vmatpush1.bf16.msra.mxu0 %v864
  %1172 = vmatprep.subr.bf16.mxu0 0
  %1173 = vmatpush1.bf16.msra.mxu0 %v863
  %1174 = vmatprep.subr.bf16.mxu0 0
  %1175 = vmatpush1.bf16.msra.mxu0 %v862
  %1176 = vmatprep.subr.bf16.mxu0 0
  %1177 = vmatpush1.bf16.msra.mxu0 %v861
  %1178 = vmatprep.subr.bf16.mxu0 0
  %1179 = vmatpush1.bf16.msra.mxu0 %v860
  %1180 = vmatprep.subr.bf16.mxu0 0
  %1181 = vmatpush2.bf16.msra.mxu0 %v875
  %1182 = vmatprep.subr.bf16.mxu0 0
  %1183 = vmatpush2.bf16.msra.mxu0 %v874
  %1184 = vmatprep.subr.bf16.mxu0 0
  %1185 = vmatpush2.bf16.msra.mxu0 %v873
  %1186 = vmatprep.subr.bf16.mxu0 0
  %1187 = vmatpush2.bf16.msra.mxu0 %v872
  %1188 = vmatprep.subr.bf16.mxu0 0
  %1189 = vmatpush2.bf16.msra.mxu0 %v871
  %1190 = vmatprep.subr.bf16.mxu0 0
  %1191 = vmatpush2.bf16.msra.mxu0 %v870
  %1192 = vmatprep.subr.bf16.mxu0 0
  %1193 = vmatpush2.bf16.msra.mxu0 %v869
  %1194 = vmatprep.subr.bf16.mxu0 0
  %1195 = vmatpush2.bf16.msra.mxu0 %v868
  %1196 = vmatprep.mubr.bf16.mxu0 %v42
  %1197 = vmatmul.mubr.bf16.gmra.mxu0 %v41
  %v1198 = vpop.f32.mrf.mxu0
  %v1199 = vadd.f32 %v1159, %v1198
  %v1200 = vpop.f32.mrf.mxu0
  %v1201 = vpop.f32.mrf.mxu0
  %v1202 = vpop.f32.mrf.mxu0
  %1203 = vdwg.mxu0
  %1204 = vmatprep.subr.bf16.mxu0 0
  %1205 = vmatpush1.bf16.msra.mxu0 %v883
  %1206 = vmatprep.subr.bf16.mxu0 0
  %1207 = vmatpush1.bf16.msra.mxu0 %v882
  %1208 = vmatprep.subr.bf16.mxu0 0
  %1209 = vmatpush1.bf16.msra.mxu0 %v881
  %1210 = vmatprep.subr.bf16.mxu0 0
  %1211 = vmatpush1.bf16.msra.mxu0 %v880
  %1212 = vmatprep.subr.bf16.mxu0 0
  %1213 = vmatpush1.bf16.msra.mxu0 %v879
  %1214 = vmatprep.subr.bf16.mxu0 0
  %1215 = vmatpush1.bf16.msra.mxu0 %v878
  %1216 = vmatprep.subr.bf16.mxu0 0
  %1217 = vmatpush1.bf16.msra.mxu0 %v877
  %1218 = vmatprep.subr.bf16.mxu0 0
  %1219 = vmatpush1.bf16.msra.mxu0 %v876
  %1220 = vmatprep.subr.bf16.mxu0 0
  %1221 = vmatpush2.bf16.msra.mxu0 %v891
  %1222 = vmatprep.subr.bf16.mxu0 0
  %1223 = vmatpush2.bf16.msra.mxu0 %v890
  %1224 = vmatprep.subr.bf16.mxu0 0
  %1225 = vmatpush2.bf16.msra.mxu0 %v889
  %1226 = vmatprep.subr.bf16.mxu0 0
  %1227 = vmatpush2.bf16.msra.mxu0 %v888
  %1228 = vmatprep.subr.bf16.mxu0 0
  %1229 = vmatpush2.bf16.msra.mxu0 %v887
  %1230 = vmatprep.subr.bf16.mxu0 0
  %1231 = vmatpush2.bf16.msra.mxu0 %v886
  %1232 = vmatprep.subr.bf16.mxu0 0
  %1233 = vmatpush2.bf16.msra.mxu0 %v885
  %1234 = vmatprep.subr.bf16.mxu0 0
  %1235 = vmatpush2.bf16.msra.mxu0 %v884
  %1236 = vmatprep.mubr.bf16.mxu0 %v44
  %1237 = vmatmul.mubr.bf16.gmra.mxu0 %v43
  %v1238 = vpop.f32.mrf.mxu0
  %v1239 = vadd.f32 %v1199, %v1238
  %v1240 = vpop.f32.mrf.mxu0
  %v1241 = vpop.f32.mrf.mxu0
  %v1242 = vpop.f32.mrf.mxu0
  %1243 = vdwg.mxu0
  %1244 = vmatprep.subr.bf16.mxu0 0
  %1245 = vmatpush1.bf16.msra.mxu0 %v899
  %1246 = vmatprep.subr.bf16.mxu0 0
  %1247 = vmatpush1.bf16.msra.mxu0 %v898
  %1248 = vmatprep.subr.bf16.mxu0 0
  %1249 = vmatpush1.bf16.msra.mxu0 %v897
  %1250 = vmatprep.subr.bf16.mxu0 0
  %1251 = vmatpush1.bf16.msra.mxu0 %v896
  %1252 = vmatprep.subr.bf16.mxu0 0
  %1253 = vmatpush1.bf16.msra.mxu0 %v895
  %1254 = vmatprep.subr.bf16.mxu0 0
  %1255 = vmatpush1.bf16.msra.mxu0 %v894
  %1256 = vmatprep.subr.bf16.mxu0 0
  %1257 = vmatpush1.bf16.msra.mxu0 %v893
  %1258 = vmatprep.subr.bf16.mxu0 0
  %1259 = vmatpush1.bf16.msra.mxu0 %v892
  %1260 = vmatprep.subr.bf16.mxu0 0
  %1261 = vmatpush2.bf16.msra.mxu0 %v907
  %1262 = vmatprep.subr.bf16.mxu0 0
  %1263 = vmatpush2.bf16.msra.mxu0 %v906
  %1264 = vmatprep.subr.bf16.mxu0 0
  %1265 = vmatpush2.bf16.msra.mxu0 %v905
  %1266 = vmatprep.subr.bf16.mxu0 0
  %1267 = vmatpush2.bf16.msra.mxu0 %v904
  %1268 = vmatprep.subr.bf16.mxu0 0
  %1269 = vmatpush2.bf16.msra.mxu0 %v903
  %1270 = vmatprep.subr.bf16.mxu0 0
  %1271 = vmatpush2.bf16.msra.mxu0 %v902
  %1272 = vmatprep.subr.bf16.mxu0 0
  %1273 = vmatpush2.bf16.msra.mxu0 %v901
  %1274 = vmatprep.subr.bf16.mxu0 0
  %1275 = vmatpush2.bf16.msra.mxu0 %v900
  %1276 = vmatprep.mubr.bf16.mxu0 %v46
  %1277 = vmatmul.mubr.bf16.gmra.mxu0 %v45
  %v1278 = vpop.f32.mrf.mxu0
  %v1279 = vadd.f32 %v1239, %v1278
  %v1280 = vpop.f32.mrf.mxu0
  %v1281 = vpop.f32.mrf.mxu0
  %v1282 = vpop.f32.mrf.mxu0
  %1283 = vdwg.mxu0
  %1284 = vmatprep.subr.bf16.mxu0 0
  %1285 = vmatpush1.bf16.msra.mxu0 %v915
  %1286 = vmatprep.subr.bf16.mxu0 0
  %1287 = vmatpush1.bf16.msra.mxu0 %v914
  %1288 = vmatprep.subr.bf16.mxu0 0
  %1289 = vmatpush1.bf16.msra.mxu0 %v913
  %1290 = vmatprep.subr.bf16.mxu0 0
  %1291 = vmatpush1.bf16.msra.mxu0 %v912
  %1292 = vmatprep.subr.bf16.mxu0 0
  %1293 = vmatpush1.bf16.msra.mxu0 %v911
  %1294 = vmatprep.subr.bf16.mxu0 0
  %1295 = vmatpush1.bf16.msra.mxu0 %v910
  %1296 = vmatprep.subr.bf16.mxu0 0
  %1297 = vmatpush1.bf16.msra.mxu0 %v909
  %1298 = vmatprep.subr.bf16.mxu0 0
  %1299 = vmatpush1.bf16.msra.mxu0 %v908
  %1300 = vmatprep.subr.bf16.mxu0 0
  %1301 = vmatpush2.bf16.msra.mxu0 %v923
  %1302 = vmatprep.subr.bf16.mxu0 0
  %1303 = vmatpush2.bf16.msra.mxu0 %v922
  %1304 = vmatprep.subr.bf16.mxu0 0
  %1305 = vmatpush2.bf16.msra.mxu0 %v921
  %1306 = vmatprep.subr.bf16.mxu0 0
  %1307 = vmatpush2.bf16.msra.mxu0 %v920
  %1308 = vmatprep.subr.bf16.mxu0 0
  %1309 = vmatpush2.bf16.msra.mxu0 %v919
  %1310 = vmatprep.subr.bf16.mxu0 0
  %1311 = vmatpush2.bf16.msra.mxu0 %v918
  %1312 = vmatprep.subr.bf16.mxu0 0
  %1313 = vmatpush2.bf16.msra.mxu0 %v917
  %1314 = vmatprep.subr.bf16.mxu0 0
  %1315 = vmatpush2.bf16.msra.mxu0 %v916
  %1316 = vmatprep.mubr.bf16.mxu0 %v48
  %1317 = vmatmul.mubr.bf16.gmra.mxu0 %v47
  %v1318 = vpop.f32.mrf.mxu0
  %v1319 = vadd.f32 %v1279, %v1318
  %v1320 = vpop.f32.mrf.mxu0
  %v1321 = vpop.f32.mrf.mxu0
  %v1322 = vpop.f32.mrf.mxu0
  %1323 = vdwg.mxu0
  %1324 = vmatprep.subr.bf16.mxu0 0
  %1325 = vmatpush1.bf16.msra.mxu0 %v931
  %1326 = vmatprep.subr.bf16.mxu0 0
  %1327 = vmatpush1.bf16.msra.mxu0 %v930
  %1328 = vmatprep.subr.bf16.mxu0 0
  %1329 = vmatpush1.bf16.msra.mxu0 %v929
  %1330 = vmatprep.subr.bf16.mxu0 0
  %1331 = vmatpush1.bf16.msra.mxu0 %v928
  %1332 = vmatprep.subr.bf16.mxu0 0
  %1333 = vmatpush1.bf16.msra.mxu0 %v927
  %1334 = vmatprep.subr.bf16.mxu0 0
  %1335 = vmatpush1.bf16.msra.mxu0 %v926
  %1336 = vmatprep.subr.bf16.mxu0 0
  %1337 = vmatpush1.bf16.msra.mxu0 %v925
  %1338 = vmatprep.subr.bf16.mxu0 0
  %1339 = vmatpush1.bf16.msra.mxu0 %v924
  %1340 = vmatprep.subr.bf16.mxu0 0
  %1341 = vmatpush2.bf16.msra.mxu0 %v939
  %1342 = vmatprep.subr.bf16.mxu0 0
  %1343 = vmatpush2.bf16.msra.mxu0 %v938
  %1344 = vmatprep.subr.bf16.mxu0 0
  %1345 = vmatpush2.bf16.msra.mxu0 %v937
  %1346 = vmatprep.subr.bf16.mxu0 0
  %1347 = vmatpush2.bf16.msra.mxu0 %v936
  %1348 = vmatprep.subr.bf16.mxu0 0
  %1349 = vmatpush2.bf16.msra.mxu0 %v935
  %1350 = vmatprep.subr.bf16.mxu0 0
  %1351 = vmatpush2.bf16.msra.mxu0 %v934
  %1352 = vmatprep.subr.bf16.mxu0 0
  %1353 = vmatpush2.bf16.msra.mxu0 %v933
  %1354 = vmatprep.subr.bf16.mxu0 0
  %1355 = vmatpush2.bf16.msra.mxu0 %v932
  %1356 = vmatprep.mubr.bf16.mxu0 %v50
  %1357 = vmatmul.mubr.bf16.gmra.mxu0 %v49
  %v1358 = vpop.f32.mrf.mxu0
  %v1359 = vadd.f32 %v1319, %v1358
  %v1360 = vpop.f32.mrf.mxu0
  %v1361 = vpop.f32.mrf.mxu0
  %v1362 = vpop.f32.mrf.mxu0
  %1363 = vdwg.mxu0
  %1364 = vmatprep.subr.bf16.mxu0 0
  %1365 = vmatpush1.bf16.msra.mxu0 %v947
  %1366 = vmatprep.subr.bf16.mxu0 0
  %1367 = vmatpush1.bf16.msra.mxu0 %v946
  %1368 = vmatprep.subr.bf16.mxu0 0
  %1369 = vmatpush1.bf16.msra.mxu0 %v945
  %1370 = vmatprep.subr.bf16.mxu0 0
  %1371 = vmatpush1.bf16.msra.mxu0 %v944
  %1372 = vmatprep.subr.bf16.mxu0 0
  %1373 = vmatpush1.bf16.msra.mxu0 %v943
  %1374 = vmatprep.subr.bf16.mxu0 0
  %1375 = vmatpush1.bf16.msra.mxu0 %v942
  %1376 = vmatprep.subr.bf16.mxu0 0
  %1377 = vmatpush1.bf16.msra.mxu0 %v941
  %1378 = vmatprep.subr.bf16.mxu0 0
  %1379 = vmatpush1.bf16.msra.mxu0 %v940
  %1380 = vmatprep.subr.bf16.mxu0 0
  %1381 = vmatpush2.bf16.msra.mxu0 %v955
  %1382 = vmatprep.subr.bf16.mxu0 0
  %1383 = vmatpush2.bf16.msra.mxu0 %v954
  %1384 = vmatprep.subr.bf16.mxu0 0
  %1385 = vmatpush2.bf16.msra.mxu0 %v953
  %1386 = vmatprep.subr.bf16.mxu0 0
  %1387 = vmatpush2.bf16.msra.mxu0 %v952
  %1388 = vmatprep.subr.bf16.mxu0 0
  %1389 = vmatpush2.bf16.msra.mxu0 %v951
  %1390 = vmatprep.subr.bf16.mxu0 0
  %1391 = vmatpush2.bf16.msra.mxu0 %v950
  %1392 = vmatprep.subr.bf16.mxu0 0
  %1393 = vmatpush2.bf16.msra.mxu0 %v949
  %1394 = vmatprep.subr.bf16.mxu0 0
  %1395 = vmatpush2.bf16.msra.mxu0 %v948
  %1396 = vmatprep.mubr.bf16.mxu0 %v52
  %1397 = vmatmul.mubr.bf16.gmra.mxu0 %v51
  %v1398 = vpop.f32.mrf.mxu0
  %v1399 = vadd.f32 %v1359, %v1398
  %v1400 = vpop.f32.mrf.mxu0
  %v1401 = vpop.f32.mrf.mxu0
  %v1402 = vpop.f32.mrf.mxu0
  %1403 = vdwg.mxu0
  %vm1404 = vcmp.gt.f32.partialorder %v1399, 0.0
  %v1405 = vmul.f32 %v1399, 0.2
  %v1406 = vsel %vm1404, %v1399, %v1405
  %v1407 = vpack.c.bf16 %v1406, %v1406
  %v1408 = vld [vmem:[%s3] sm:$0xf]
  %v1409 = vld [vmem:[%s3 + $0x4] sm:$0xf]
  %v1410 = vld [vmem:[%s3 + $0x8] sm:$0xf]
  %v1411 = vld [vmem:[%s3 + $0xc] sm:$0xf]
  %v1412 = vld [vmem:[%s3 + $0x10] sm:$0xf]
  %v1413 = vld [vmem:[%s3 + $0x14] sm:$0xf]
  %v1414 = vld [vmem:[%s3 + $0x18] sm:$0xf]
  %v1415 = vld [vmem:[%s3 + $0x1c] sm:$0xf]
  %v1416 = vld [vmem:[%s3 + $0x20] sm:$0xf]
  %v1417 = vld [vmem:[%s3 + $0x24] sm:$0xf]
  %v1418 = vld [vmem:[%s3 + $0x28] sm:$0xf]
  %v1419 = vld [vmem:[%s3 + $0x2c] sm:$0xf]
  %v1420 = vld [vmem:[%s3 + $0x30] sm:$0xf]
  %v1421 = vld [vmem:[%s3 + $0x34] sm:$0xf]
  %v1422 = vld [vmem:[%s3 + $0x38] sm:$0xf]
  %v1423 = vld [vmem:[%s3 + $0x3c] sm:$0xf]
  %v1424 = vld [vmem:[%s4] sm:$0x1]
  %v1426 = vlaneseq
  %v1427 = vshrl.u32 %v1426, 7
  %v1428 = vsub.s32 0, %v1427
  %v1429 = vrot.slane %v1424, %v1428
  %v1447 = vunpack.c.l.b16 %v1408
  %v1448 = vunpack.c.l.b16 %v1409
  %v1449 = vunpack.c.l.b16 %v1410
  %v1450 = vunpack.c.l.b16 %v1411
  %v1451 = vunpack.c.l.b16 %v1412
  %v1452 = vunpack.c.l.b16 %v1413
  %v1453 = vunpack.c.l.b16 %v1414
  %v1454 = vunpack.c.l.b16 %v1415
  %v1455 = vunpack.c.l.b16 %v1416
  %v1456 = vunpack.c.l.b16 %v1417
  %v1457 = vunpack.c.l.b16 %v1418
  %v1458 = vunpack.c.l.b16 %v1419
  %v1459 = vunpack.c.l.b16 %v1420
  %v1460 = vunpack.c.l.b16 %v1421
  %v1461 = vunpack.c.l.b16 %v1422
  %v1462 = vunpack.c.l.b16 %v1423
  %v1463 = vpack.c.b16 %v1448, %v1447
  %v1464 = vpack.c.b16 %v1450, %v1449
  %v1465 = vpack.c.b16 %v1452, %v1451
  %v1466 = vpack.c.b16 %v1454, %v1453
  %v1467 = vpack.c.b16 %v1456, %v1455
  %v1468 = vpack.c.b16 %v1458, %v1457
  %v1469 = vpack.c.b16 %v1460, %v1459
  %v1470 = vpack.c.b16 %v1462, %v1461
  %1479 = vmatprep.subr.bf16.mxu0 0
  %1480 = vmatpush1.bf16.msra.mxu0 %v1470
  %1481 = vmatprep.subr.bf16.mxu0 0
  %1482 = vmatpush1.bf16.msra.mxu0 %v1469
  %1483 = vmatprep.subr.bf16.mxu0 0
  %1484 = vmatpush1.bf16.msra.mxu0 %v1468
  %1485 = vmatprep.subr.bf16.mxu0 0
  %1486 = vmatpush1.bf16.msra.mxu0 %v1467
  %1487 = vmatprep.subr.bf16.mxu0 0
  %1488 = vmatpush1.bf16.msra.mxu0 %v1466
  %1489 = vmatprep.subr.bf16.mxu0 0
  %1490 = vmatpush1.bf16.msra.mxu0 %v1465
  %1491 = vmatprep.subr.bf16.mxu0 0
  %1492 = vmatpush1.bf16.msra.mxu0 %v1464
  %1493 = vmatprep.subr.bf16.mxu0 0
  %1494 = vmatpush1.bf16.msra.mxu0 %v1463
  %1495 = vmatprep.subr.bf16.mxu0 0
  %1496 = vmatpush2.bf16.msra.mxu0 0
  %1497 = vmatprep.subr.bf16.mxu0 0
  %1498 = vmatpush2.bf16.msra.mxu0 0
  %1499 = vmatprep.subr.bf16.mxu0 0
  %1500 = vmatpush2.bf16.msra.mxu0 0
  %1501 = vmatprep.subr.bf16.mxu0 0
  %1502 = vmatpush2.bf16.msra.mxu0 0
  %1503 = vmatprep.subr.bf16.mxu0 0
  %1504 = vmatpush2.bf16.msra.mxu0 0
  %1505 = vmatprep.subr.bf16.mxu0 0
  %1506 = vmatpush2.bf16.msra.mxu0 0
  %1507 = vmatprep.subr.bf16.mxu0 0
  %1508 = vmatpush2.bf16.msra.mxu0 0
  %1509 = vmatprep.subr.bf16.mxu0 0
  %1510 = vmatpush2.bf16.msra.mxu0 0
  %1511 = vmatprep.mubr.bf16.mxu0 0
  %1512 = vmatmul.mubr.bf16.gmra.mxu0 %v1407
  %v1513 = vpop.f32.mrf.mxu0
  %v1514 = vadd.f32 %v1429, %v1513
  %v1515 = vpop.f32.mrf.mxu0
  %v1516 = vpop.f32.mrf.mxu0
  %v1517 = vpop.f32.mrf.mxu0
  %1518 = vdwg.mxu0
  %1519 = vst [vmem:[%s5] sm:$0xff] %v1514
  // Predicated region
  $region22: #{aug_wrapper_forward.1} parent=0 // pred_check
    _
  $region23: #{aug_wrapper_forward.1} parent=0 // pred_check_branch
    %1521 = sbr.rel (0) target = $region25
  $region24: #{aug_wrapper_forward.1} parent=0 // pred_region
    _
  $region25: #{aug_wrapper_forward.1} parent=0 // pred_fallthru
    _
  // Predicated region
  $region26: #{aug_wrapper_forward.1} parent=0 // pred_check
    _
  $region27: #{aug_wrapper_forward.1} parent=0 // pred_check_branch
    %1523 = sbr.rel (0) target = $region29
  $region28: #{aug_wrapper_forward.1} parent=0 // pred_region
    _
  $region29: #{aug_wrapper_forward.1} parent=0 // pred_fallthru
    _

</llo_original>
